<compile_context>
chip_gen: v7x
topology: tpu7x:2x2x1
jax: 0.10.0
libtpu: 0.0.40
codegen_flags: <defaults>
</compile_context>

<pallas_src>
import jax
import jax.numpy as jnp
from jax.experimental import pallas as pl
from jax.experimental.pallas import tpu as pltpu


def _round_up(x, m):
    return ((x + m - 1) // m) * m


def _make_kernel(resident, tk_eff):
    def kernel(adj_ref, msg_ref, ci_dst_ref, out_ref):
        # adj_ref:    [tm, tk]        int8  adjacency tile A[dst_tile, src_tile]
        # msg_ref:    [Nk, Dp]/[tk,Dp] bf16 pre-scaled message (feature * ci)
        # ci_dst_ref: [tm, 1]         f32   per-destination normalizer
        # out_ref:    [tm, Dp]        f32   output tile, resident across K (accumulator)
        k = pl.program_id(1)

        @pl.when(k == 0)
        def _():
            out_ref[...] = jnp.zeros_like(out_ref)

        if resident:
            start = pl.multiple_of(k * tk_eff, tk_eff)
            msg = msg_ref[pl.ds(start, tk_eff), :]          # [tk, Dp] bf16
        else:
            msg = msg_ref[...]                              # [tk, Dp] bf16

        # int8 -> bf16 upcast on the VPU (slack while HBM-bound); exact for 0/1.
        adj = adj_ref[...].astype(jnp.float32).astype(jnp.bfloat16)
        out_ref[...] += jnp.dot(adj, msg, preferred_element_type=jnp.float32)

        @pl.when(k == pl.num_programs(1) - 1)
        def _():
            out_ref[...] *= ci_dst_ref[...]

    return kernel


def gcn_interaction_dis(adj, feature, ci, *, tm=512, tk=1024,
                        resident_msg_budget=24 * 1024 * 1024):
    """rst = (adj @ (feature * ci)) * ci, K-tiled, accumulating in the f32 output."""
    N, D = feature.shape
    assert adj.shape == (N, N)
    assert ci.shape == (N, 1)

    # dst tile: multiple of 32 (int8 adjacency sublane tiling); src/K tile:
    # multiple of 128 (adjacency lane axis). Padded rows/cols are zero, so they
    # contribute nothing; padded dst rows are sliced off at the end.
    tm_eff = min(tm, _round_up(N, 32))
    tk_eff = min(tk, _round_up(N, 128))
    Nm = _round_up(N, tm_eff)
    Nk = _round_up(N, tk_eff)
    Dp = _round_up(D, 128)

    # int8 adjacency (exact for 0/1): half of bf16, quarter of f32 HBM traffic.
    # TODO(synk): for a static graph, do this conversion/padding once at graph
    # construction time instead of per call.
    adj_i8 = adj.astype(jnp.int8)
    if (Nm, Nk) != (N, N):
        adj_i8 = jnp.zeros((Nm, Nk), jnp.int8).at[:N, :N].set(adj_i8)

    # Pre-scaled bf16 message, fused into the (already needed) padding copy.
    msg = (feature.astype(jnp.float32) * ci.astype(jnp.float32)).astype(jnp.bfloat16)
    if (Nk, Dp) != (N, D):
        msg = jnp.zeros((Nk, Dp), jnp.bfloat16).at[:N, :D].set(msg)

    ci_dst = ci.astype(jnp.float32)
    if Nm != N:
        ci_dst = jnp.zeros((Nm, 1), jnp.float32).at[:N, :].set(ci_dst)

    # Keep the whole message VMEM-resident (fetched once) when it fits budget.
    resident = (Nk * Dp * 2) <= resident_msg_budget
    if resident:
        msg_spec = pl.BlockSpec((Nk, Dp), lambda i, k: (0, 0))
    else:
        msg_spec = pl.BlockSpec((tk_eff, Dp), lambda i, k: (k, 0))

    grid = (Nm // tm_eff, Nk // tk_eff)

    out = pl.pallas_call(
        _make_kernel(resident, tk_eff),
        out_shape=jax.ShapeDtypeStruct((Nm, Dp), jnp.float32),
        grid_spec=pltpu.PrefetchScalarGridSpec(
            num_scalar_prefetch=0,
            grid=grid,
            in_specs=[
                pl.BlockSpec((tm_eff, tk_eff), lambda i, k: (i, k)),  # adj tile (int8)
                msg_spec,                                             # bf16 message
                pl.BlockSpec((tm_eff, 1), lambda i, k: (i, 0)),       # ci for dst tile
            ],
            out_specs=pl.BlockSpec((tm_eff, Dp), lambda i, k: (i, 0)),
        ),
        compiler_params=pltpu.CompilerParams(
            dimension_semantics=("parallel", "arbitrary"),
            vmem_limit_bytes=48 * 1024 * 1024,   # headroom below v7x's 64 MiB/TC
        ),
    )(adj_i8, msg, ci_dst)

    return out[:N, :D].astype(feature.dtype)


def _reference(adj, feature, ci):
    return (adj @ (feature * ci)) * ci


if __name__ == "__main__":
    # Small synthetic graph: N nodes, D-dim node features.
    N, D = 32, 128
    key = jax.random.PRNGKey(0)
    k_adj, k_feat = jax.random.split(key)

    # Deterministic random adjacency (dense 0/1, A[dst, src]).
    adj = (jax.random.uniform(k_adj, (N, N)) < 0.25).astype(jnp.float32)

    # GCN-style symmetric normalizer ci = deg^{-1/2} (clamped to avoid div-by-0).
    deg = jnp.maximum(adj.sum(axis=1, keepdims=True), 1.0)     # in-degree per node
    ci = jax.lax.rsqrt(deg).astype(jnp.float32)                # [N, 1]

    feature = jax.random.normal(k_feat, (N, D), dtype=jnp.float32)

    out = gcn_interaction_dis(adj, feature, ci)
    out = jax.block_until_ready(out)

    ref = _reference(adj, feature, ci)
    # Tolerance loosened: the message is pre-cast to bf16 for the MXU
    # (adjacency 0/1 is exact in int8/bf16; accumulation is f32).
    assert jnp.allclose(out, ref, atol=1e-2, rtol=1e-2), "mismatch vs reference"

    print("KERNEL_OK")
</pallas_src>

<mosaic_0001>
module attributes {stable_mosaic.version = 11 : i64} {
  func.func @kernel(%arg0: i32, %arg1: i32, %arg2: memref<32x128xi8, #tpu.memory_space<vmem>>, %arg3: memref<128x128xbf16, #tpu.memory_space<vmem>>, %arg4: memref<32x1xf32, #tpu.memory_space<vmem>>, %arg5: memref<32x128xf32, #tpu.memory_space<vmem>>) attributes {dimension_semantics = [#tpu.dimension_semantics<parallel>, #tpu.dimension_semantics<arbitrary>], iteration_bounds = array<i64: 1, 1>, scalar_prefetch = 0 : i64, scratch_operands = 0 : i64, tpu.core_type = #tpu.core_type<tc>, window_params = [{transform_indices = @transform_0, window_bounds = array<i64: 32, 128>}, {pipeline_mode = #tpu.pipeline_mode<synchronous>, transform_indices = @transform_1, window_bounds = array<i64: 128, 128>}, {transform_indices = @transform_2, window_bounds = array<i64: 32, 1>}, {transform_indices = @transform_3, window_bounds = array<i64: 32, 128>}]} {
    %c0_i32 = arith.constant 0 : i32
    %0 = arith.cmpi eq, %arg1, %c0_i32 : i32
    %1 = arith.extui %0 : i1 to i32
    %c0_i32_0 = arith.constant 0 : i32
    %2 = arith.cmpi ne, %1, %c0_i32_0 : i32
    scf.if %2 {
      %cst_9 = arith.constant 0.000000e+00 : f32
      %17 = vector.broadcast %cst_9 : f32 to vector<32x128xf32>
      %c0_10 = arith.constant 0 : index
      %c0_11 = arith.constant 0 : index
      %18 = vector.load %arg5[%c0_10, %c0_11] : memref<32x128xf32, #tpu.memory_space<vmem>>, vector<32x128xf32>
      tpu.vector_store %arg5[%c0_10, %c0_11], %17 {strides = array<i32>} : memref<32x128xf32, #tpu.memory_space<vmem>>, vector<32x128xf32>,
    } else {
    }
    %c128_i32 = arith.constant 128 : i32
    %3 = arith.muli %arg1, %c128_i32 : i32
    %4 = tpu.assume_multiple %3, 128 : i32
    %5 = arith.index_cast %4 : i32 to index
    %c0 = arith.constant 0 : index
    %6 = vector.load %arg3[%5, %c0] : memref<128x128xbf16, #tpu.memory_space<vmem>>, vector<128x128xbf16>
    %c0_1 = arith.constant 0 : index
    %c0_2 = arith.constant 0 : index
    %7 = vector.load %arg2[%c0_1, %c0_2] : memref<32x128xi8, #tpu.memory_space<vmem>>, vector<32x128xi8>
    %8 = arith.sitofp %7 : vector<32x128xi8> to vector<32x128xf32>
    %9 = arith.truncf %8 : vector<32x128xf32> to vector<32x128xbf16>
    %c0_3 = arith.constant 0 : index
    %c0_4 = arith.constant 0 : index
    %10 = vector.load %arg5[%c0_3, %c0_4] : memref<32x128xf32, #tpu.memory_space<vmem>>, vector<32x128xf32>
    %cst = arith.constant dense<0.000000e+00> : vector<32x128xf32>
    %11 = tpu.matmul %9, %6, %cst {dimension_numbers = #tpu.dot_dimension_numbers<[1], [0], [0], [1], [0, 0, 1, 1], [], []>} : vector<32x128xbf16>, vector<128x128xbf16>, vector<32x128xf32> -> vector<32x128xf32>
    %12 = arith.addf %10, %11 : vector<32x128xf32>
    %c0_5 = arith.constant 0 : index
    %c0_6 = arith.constant 0 : index
    %13 = vector.load %arg5[%c0_5, %c0_6] : memref<32x128xf32, #tpu.memory_space<vmem>>, vector<32x128xf32>
    tpu.vector_store %arg5[%c0_5, %c0_6], %12 {strides = array<i32>} : memref<32x128xf32, #tpu.memory_space<vmem>>, vector<32x128xf32>,
    %c0_i32_7 = arith.constant 0 : i32
    %14 = arith.cmpi eq, %arg1, %c0_i32_7 : i32
    %15 = arith.extui %14 : i1 to i32
    %c0_i32_8 = arith.constant 0 : i32
    %16 = arith.cmpi ne, %15, %c0_i32_8 : i32
    scf.if %16 {
      %c0_9 = arith.constant 0 : index
      %c0_10 = arith.constant 0 : index
      %17 = vector.load %arg5[%c0_9, %c0_10] : memref<32x128xf32, #tpu.memory_space<vmem>>, vector<32x128xf32>
      %c0_11 = arith.constant 0 : index
      %c0_12 = arith.constant 0 : index
      %18 = vector.load %arg4[%c0_11, %c0_12] : memref<32x1xf32, #tpu.memory_space<vmem>>, vector<32x1xf32>
      %19 = vector.broadcast %18 : vector<32x1xf32> to vector<32x128xf32>
      %20 = arith.mulf %17, %19 : vector<32x128xf32>
      %c0_13 = arith.constant 0 : index
      %c0_14 = arith.constant 0 : index
      %21 = vector.load %arg5[%c0_13, %c0_14] : memref<32x128xf32, #tpu.memory_space<vmem>>, vector<32x128xf32>
      tpu.vector_store %arg5[%c0_13, %c0_14], %20 {strides = array<i32>} : memref<32x128xf32, #tpu.memory_space<vmem>>, vector<32x128xf32>,
    } else {
    }
    return
  }
  func.func @transform_0(%arg0: i32, %arg1: i32) -> (i32, i32) {
    %c0_i32 = arith.constant 0 : i32
    return %arg0, %arg1 : i32, i32
  }
  func.func @transform_1(%arg0: i32, %arg1: i32) -> (i32, i32) {
    %c0_i32 = arith.constant 0 : i32
    %c0_i32_0 = arith.constant 0 : i32
    %c0_i32_1 = arith.constant 0 : i32
    return %c0_i32, %c0_i32_0 : i32, i32
  }
  func.func @transform_2(%arg0: i32, %arg1: i32) -> (i32, i32) {
    %c0_i32 = arith.constant 0 : i32
    %c0_i32_0 = arith.constant 0 : i32
    return %arg0, %c0_i32 : i32, i32
  }
  func.func @transform_3(%arg0: i32, %arg1: i32) -> (i32, i32) {
    %c0_i32 = arith.constant 0 : i32
    %c0_i32_0 = arith.constant 0 : i32
    return %arg0, %c0_i32 : i32, i32
  }
}

</mosaic_0001>

<llo_original>
// kernel: tpu_custom_call.1
$region0: #{tpu_custom_call.1}
  #allocation0 [shape = 'u32[]', space=smem, size = 0x4, offset = 0x4, fixed_abs, tag = 'smem constant byte address 0x4 - core index']
  #allocation1 [shape = 'u32[144,128]{1,0:T(1,128)}', space=vmem, size = 0x12000, scoped, tag = 'internal scratch']
  %s0 = inlined_call_operand.vmem [shape: s8[32,128], index: 0, kind: input, shape index: {}]
  %s1 = inlined_call_operand.hbm [shape: bf16[128,128], index: 1, kind: input, shape index: {}]
  %s2 = inlined_call_operand.vmem [shape: f32[32,1], index: 2, kind: input, shape index: {}]
  %s3 = inlined_call_operand.hbm [shape: f32[32,128], index: 3, kind: output, shape index: {}]
  %s4 = sld [smem:[#allocation0]]
  $region34: #{tpu_custom_call.1} parent=0
    _
  %s6 = ssub.s32 1, %s4
  %s7 = scalar_select 0, %s6, %s4
  $region1: #{tpu_custom_call.1} parent=0
    #allocation2 [shape = 'u8[32768]{0}', space=vmem, size = 0x8000, scoped, tag = 'input window, operand 1, single buffered']
    #allocation3 [shape = 's32[1]{0}', space=sflag, size = 0x4, scoped, tag = 'scoped memory for tpu_custom_call.1']
    #allocation4 [shape = 's32[1]{0}', space=sflag, size = 0x4, scoped, tag = 'scoped memory for tpu_custom_call.1']
    #allocation5 [shape = 'u8[16384]{0}', space=vmem, size = 0x4000, scoped, tag = 'output window, operand 0, single buffered']
    %8 = vsyncpa [#allocation3], 0
    %9 = vsyncpa [#allocation4], 0
    // Predicated region
    $region2: #{tpu_custom_call.1} parent=1 // pred_check
      _
    $region3: #{tpu_custom_call.1} parent=1 // pred_check_branch
      %11 = sbr.rel (0) target = $region5
    $region4: #{tpu_custom_call.1} parent=1 // pred_region
      _
    $region5: #{tpu_custom_call.1} parent=1 // pred_fallthru
      _
    // Predicated region
    $region6: #{tpu_custom_call.1} parent=1 // pred_check
      _
    $region7: #{tpu_custom_call.1} parent=1 // pred_check_branch
      %13 = sbr.rel (0) target = $region9
    $region8: #{tpu_custom_call.1} parent=1 // pred_region
      %s15 = ssub.s32 1024, 1024
      %16 = vsyncadd [#allocation3], %s15
      %s17 = sshll.u32 [#allocation2], 4
      %s18 = int_to_ptr.vmem [resolvable:$true] %s17
      %23 = dma.hbm_to_vmem [thread:$0]  %s1, 1024, %s18, [#allocation3], 64, 64, 4
    $region9: #{tpu_custom_call.1} parent=1 // pred_fallthru
      _
    // Predicated region
    $region10: #{tpu_custom_call.1} parent=1 // pred_check
      _
    $region11: #{tpu_custom_call.1} parent=1 // pred_check_branch
      %25 = sbr.rel (0) target = $region13
    $region12: #{tpu_custom_call.1} parent=1 // pred_region
      _
    $region13: #{tpu_custom_call.1} parent=1 // pred_fallthru
      _
    // Predicated region
    $region14: #{tpu_custom_call.1} parent=1 // pred_check
      _
    $region15: #{tpu_custom_call.1} parent=1 // pred_check_branch
      %27 = sbr.rel (0) target = $region17
    $region16: #{tpu_custom_call.1} parent=1 // pred_region
      %28 = dma.done [#allocation3], 1024
    $region17: #{tpu_custom_call.1} parent=1 // pred_fallthru
      _
    %p30 = scmp.eq.s32.totalorder 0, 0
    // Predicated region
    $region18: #{tpu_custom_call.1} parent=1 // pred_check
      %p31 = pneg %p30
    $region19: #{tpu_custom_call.1} parent=1 // pred_check_branch
      %33 = sbr.rel (%p31) target = $region21
    $region20: #{tpu_custom_call.1} parent=1 // pred_region
      %34 = vst [vmem:[#allocation5] sm:$0xff] 0.0
      %35 = vst [vmem:[#allocation5 + $0x8] sm:$0xff] 0.0
      %36 = vst [vmem:[#allocation5 + $0x10] sm:$0xff] 0.0
      %37 = vst [vmem:[#allocation5 + $0x18] sm:$0xff] 0.0
    $region21: #{tpu_custom_call.1} parent=1 // pred_fallthru
      _
    %s38 = smul.u32 0, 128
    %s39 = sshra.s32 %s38, 3
    %s40 = sand.u32 %s38, 7
    %s41 = smul.addr %s39, 4
    %s42 = scalar_lea.vmem [#allocation2], %s41
    %v43 = vld [vmem:[%s42] sm:$0xf]
    %v44 = vld [vmem:[%s42 + $0x4] sm:$0xf]
    %v45 = vld [vmem:[%s42 + $0x8] sm:$0xf]
    %v46 = vld [vmem:[%s42 + $0xc] sm:$0xf]
    %v47 = vld [vmem:[%s42 + $0x10] sm:$0xf]
    %v48 = vld [vmem:[%s42 + $0x14] sm:$0xf]
    %v49 = vld [vmem:[%s42 + $0x18] sm:$0xf]
    %v50 = vld [vmem:[%s42 + $0x1c] sm:$0xf]
    %v51 = vld [vmem:[%s42 + $0x20] sm:$0xf]
    %v52 = vld [vmem:[%s42 + $0x24] sm:$0xf]
    %v53 = vld [vmem:[%s42 + $0x28] sm:$0xf]
    %v54 = vld [vmem:[%s42 + $0x2c] sm:$0xf]
    %v55 = vld [vmem:[%s42 + $0x30] sm:$0xf]
    %v56 = vld [vmem:[%s42 + $0x34] sm:$0xf]
    %v57 = vld [vmem:[%s42 + $0x38] sm:$0xf]
    %v58 = vld [vmem:[%s42 + $0x3c] sm:$0xf]
    %v59 = vld [vmem:[%s0] sm:$0xff]
    %v60 = vunpack.c.l.s8.bf16 %v59
    %v61 = vunpack.c.h.s8.bf16 %v59
    %v62 = vld [vmem:[#allocation5] sm:$0xff]
    %v63 = vld [vmem:[#allocation5 + $0x8] sm:$0xff]
    %v64 = vld [vmem:[#allocation5 + $0x10] sm:$0xff]
    %v65 = vld [vmem:[#allocation5 + $0x18] sm:$0xff]
    %v82 = vunpack.c.l.b16 %v43
    %v83 = vunpack.c.l.b16 %v44
    %v84 = vunpack.c.l.b16 %v45
    %v85 = vunpack.c.l.b16 %v46
    %v86 = vunpack.c.l.b16 %v47
    %v87 = vunpack.c.l.b16 %v48
    %v88 = vunpack.c.l.b16 %v49
    %v89 = vunpack.c.l.b16 %v50
    %v90 = vunpack.c.l.b16 %v51
    %v91 = vunpack.c.l.b16 %v52
    %v92 = vunpack.c.l.b16 %v53
    %v93 = vunpack.c.l.b16 %v54
    %v94 = vunpack.c.l.b16 %v55
    %v95 = vunpack.c.l.b16 %v56
    %v96 = vunpack.c.l.b16 %v57
    %v97 = vunpack.c.l.b16 %v58
    %v98 = vpack.c.b16 %v83, %v82
    %v99 = vpack.c.b16 %v85, %v84
    %v100 = vpack.c.b16 %v87, %v86
    %v101 = vpack.c.b16 %v89, %v88
    %v102 = vpack.c.b16 %v91, %v90
    %v103 = vpack.c.b16 %v93, %v92
    %v104 = vpack.c.b16 %v95, %v94
    %v105 = vpack.c.b16 %v97, %v96
    %114 = vmatprep.subr.bf16.mxu0 0
    %115 = vmatpush1.bf16.msra.mxu0 %v98
    %116 = vmatprep.subr.bf16.mxu0 0
    %117 = vmatpush1.bf16.msra.mxu0 %v99
    %118 = vmatprep.subr.bf16.mxu0 0
    %119 = vmatpush1.bf16.msra.mxu0 %v100
    %120 = vmatprep.subr.bf16.mxu0 0
    %121 = vmatpush1.bf16.msra.mxu0 %v101
    %122 = vmatprep.subr.bf16.mxu0 0
    %123 = vmatpush1.bf16.msra.mxu0 %v102
    %124 = vmatprep.subr.bf16.mxu0 0
    %125 = vmatpush1.bf16.msra.mxu0 %v103
    %126 = vmatprep.subr.bf16.mxu0 0
    %127 = vmatpush1.bf16.msra.mxu0 %v104
    %128 = vmatprep.subr.bf16.mxu0 0
    %129 = vmatpush1.bf16.msra.mxu0 %v105
    %130 = vmatprep.subr.bf16.mxu0 0
    %131 = vmatpush1.bf16.msra.mxu0 0
    %132 = vmatprep.subr.bf16.mxu0 0
    %133 = vmatpush1.bf16.msra.mxu0 0
    %134 = vmatprep.subr.bf16.mxu0 0
    %135 = vmatpush1.bf16.msra.mxu0 0
    %136 = vmatprep.subr.bf16.mxu0 0
    %137 = vmatpush1.bf16.msra.mxu0 0
    %138 = vmatprep.subr.bf16.mxu0 0
    %139 = vmatpush1.bf16.msra.mxu0 0
    %140 = vmatprep.subr.bf16.mxu0 0
    %141 = vmatpush1.bf16.msra.mxu0 0
    %142 = vmatprep.subr.bf16.mxu0 0
    %143 = vmatpush1.bf16.msra.mxu0 0
    %144 = vmatprep.subr.bf16.mxu0 0
    %145 = vmatpush1.bf16.msra.mxu0 0
    %146 = vmatprep.mubr.bf16.mxu0 0
    %147 = vmatmul.mubr.bf16.gmra.mrb[0].mxu0 %v60
    %v148 = vpop.f32.mrb[0].mxu0
    %v149 = vadd.f32 0.0, %v148
    %v150 = vpop.f32.mrb[0].mxu0
    %v151 = vpop.f32.mrb[0].mxu0
    %v152 = vadd.f32 0.0, %v151
    %v153 = vpop.f32.mrb[0].mxu0
    %154 = vmatprep.mubr.bf16.mxu0 0
    %155 = vmatmul.mubr.bf16.gmra.mrb[0].mxu0 %v61
    %v156 = vpop.f32.mrb[0].mxu0
    %v157 = vadd.f32 0.0, %v156
    %v158 = vpop.f32.mrb[0].mxu0
    %v159 = vpop.f32.mrb[0].mxu0
    %v160 = vadd.f32 0.0, %v159
    %v161 = vpop.f32.mrb[0].mxu0
    %162 = vdwg.mxu0
    %v163 = vadd.f32 %v62, %v149
    %v164 = vadd.f32 %v63, %v152
    %v165 = vadd.f32 %v64, %v157
    %v166 = vadd.f32 %v65, %v160
    %167 = vst [vmem:[#allocation5] sm:$0xff] %v163
    %168 = vst [vmem:[#allocation5 + $0x8] sm:$0xff] %v164
    %169 = vst [vmem:[#allocation5 + $0x10] sm:$0xff] %v165
    %170 = vst [vmem:[#allocation5 + $0x18] sm:$0xff] %v166
    // Predicated region
    $region22: #{tpu_custom_call.1} parent=1 // pred_check
      %p171 = pneg %p30
    $region23: #{tpu_custom_call.1} parent=1 // pred_check_branch
      %173 = sbr.rel (%p171) target = $region25
    $region24: #{tpu_custom_call.1} parent=1 // pred_region
      %v174 = vld [vmem:[#allocation5] sm:$0xff]
      %v175 = vld [vmem:[#allocation5 + $0x8] sm:$0xff]
      %v176 = vld [vmem:[#allocation5 + $0x10] sm:$0xff]
      %v177 = vld [vmem:[#allocation5 + $0x18] sm:$0xff]
      %v178 = vld [vmem:[%s2] sm:$0xff]
      %v179 = vld [vmem:[%s2 + $0x8] sm:$0xff]
      %v180 = vld [vmem:[%s2 + $0x10] sm:$0xff]
      %v181 = vld [vmem:[%s2 + $0x18] sm:$0xff]
      %183 = vset.pattern.permute.xlu0 0
      %184 = vperm.xlu0 %183, %v178
      %v185 = vpop.permute.xlu0 %184
      %188 = vset.pattern.permute.xlu0 0
      %189 = vperm.xlu0 %188, %v179
      %v190 = vpop.permute.xlu0 %189
      %193 = vset.pattern.permute.xlu0 0
      %194 = vperm.xlu0 %193, %v180
      %v195 = vpop.permute.xlu0 %194
      %198 = vset.pattern.permute.xlu0 0
      %199 = vperm.xlu0 %198, %v181
      %v200 = vpop.permute.xlu0 %199
      %v202 = vmul.f32 %v174, %v185
      %v203 = vmul.f32 %v175, %v190
      %v204 = vmul.f32 %v176, %v195
      %v205 = vmul.f32 %v177, %v200
      %206 = vst [vmem:[#allocation5] sm:$0xff] %v202
      %207 = vst [vmem:[#allocation5 + $0x8] sm:$0xff] %v203
      %208 = vst [vmem:[#allocation5 + $0x10] sm:$0xff] %v204
      %209 = vst [vmem:[#allocation5 + $0x18] sm:$0xff] %v205
    $region25: #{tpu_custom_call.1} parent=1 // pred_fallthru
      _
    // Predicated region
    $region26: #{tpu_custom_call.1} parent=1 // pred_check
      _
    $region27: #{tpu_custom_call.1} parent=1 // pred_check_branch
      %211 = sbr.rel (0) target = $region29
    $region28: #{tpu_custom_call.1} parent=1 // pred_region
      %s213 = ssub.s32 512, 512
      %214 = vsyncadd [#allocation4], %s213
      %s215 = sshll.u32 [#allocation5], 4
      %s216 = int_to_ptr.vmem [resolvable:$true] %s215
      %221 = dma.vmem_to_hbm [thread:$0]  %s216, 512, %s3, [#allocation4], 128, 128, 8
    $region29: #{tpu_custom_call.1} parent=1 // pred_fallthru
      _
    // Predicated region
    $region30: #{tpu_custom_call.1} parent=1 // pred_check
      _
    $region31: #{tpu_custom_call.1} parent=1 // pred_check_branch
      %223 = sbr.rel (0) target = $region33
    $region32: #{tpu_custom_call.1} parent=1 // pred_region
      %224 = dma.done [#allocation4], 512
    $region33: #{tpu_custom_call.1} parent=1 // pred_fallthru
      _
    %225 = vsyncpa [#allocation3], 1
    %226 = vsyncpa [#allocation4], 1

</llo_original>
